<compile_context>
chip_gen: v5e
topology: v5e:2x2
jax: 0.10.0
libtpu: 0.0.40
codegen_flags: <defaults>
</compile_context>

<pallas_src>
import functools

import jax
import jax.numpy as jnp
from jax import lax
from jax.experimental import pallas as pl
from jax.experimental.pallas import tpu as pltpu


_MAX_ROW_TILE = 8192   # hard cap on rows per grid step
_MIN_BLOCKS = 4        # keep >=4 grid blocks so v7x megacore stays fed


def _round_up(x: int, m: int) -> int:
    return ((x + m - 1) // m) * m


def _sublane_multiple(itemsize: int) -> int:
    # f32 -> 8, bf16/f16 -> 16, int8/fp8 -> 32 (sublane packing constraint)
    return {4: 8, 2: 16, 1: 32}.get(itemsize, 8)


@functools.lru_cache(maxsize=None)
def _vmem_limit_bytes() -> int:
    """Scoped-VMEM limit: ~48 MiB where physical VMEM allows (v5e/v6e/v7x),
    clamped to 3/4 of the reported per-core capacity otherwise."""
    limit = 48 << 20
    try:
        phys = int(pltpu.get_tpu_info().vmem_capacity_bytes)
        limit = min(limit, (phys * 3) // 4)
    except Exception:  # older jax / interpret mode — keep the conservative cap
        pass
    return limit


def _pick_row_tile(n_rows: int, n_cols: int, itemsize: int, has_mask: bool,
                   vmem_budget: int) -> int:
    """Largest row tile that fits the double-buffered-input VMEM budget,
    rounded to the dtype sublane multiple, capped so at least _MIN_BLOCKS
    grid steps remain, and never larger than one padded block of the data."""
    mult = _sublane_multiple(itemsize)
    lane_cols = _round_up(max(n_cols, 1), 128)
    per_row = 2 * 2 * lane_cols * itemsize            # pred + gt, double-buffered
    if has_mask:
        per_row += 2 * 128 * 4                        # (tile,1) f32 pads to 128 lanes
    cap = max(mult, (vmem_budget // per_row) // mult * mult)
    cap = min(cap, _MAX_ROW_TILE)
    balanced = _round_up(-(-n_rows // _MIN_BLOCKS), mult)   # ceil-div, round up
    tile = min(cap, balanced, _round_up(n_rows, mult))      # round UP for tiny R
    return max(tile, mult)


def _make_colsum_kernel(loss_type: str, n_rows: int, tile: int, n_cols: int,
                        has_mask: bool):
    """Per grid step: elementwise loss of ((pred - gt) * mask) on a
    (tile, n_cols) row block, reduced over rows -> (1, 1, n_cols) partials."""
    need_row_mask = (n_rows % tile) != 0

    def compute(i, p, g, m, out_ref):
        p = p.astype(jnp.float32)
        g = g.astype(jnp.float32)
        d = p - g
        if m is not None:
            d = d * m                                  # (tile,1) row-broadcast mask
        if loss_type == "l1":
            e = jnp.abs(d)
        elif loss_type == "l2":
            e = d * d
        else:                                          # l1_smooth (Huber, beta=1)
            ad = jnp.abs(d)
            e = jnp.where(ad < 1.0, 0.5 * d * d, ad - 0.5)
        if need_row_mask:
            # (tile, 1) iota keeps mask generation off the full slab; applied
            # AFTER the loss so OOB tail garbage can never propagate NaNs.
            row_ids = lax.broadcasted_iota(jnp.int32, (tile, 1), 0) + i * tile
            e = jnp.where(row_ids < n_rows, e, 0.0)
        s = jnp.sum(e, axis=0, keepdims=True)          # (1, n_cols) column partials
        out_ref[...] = s.reshape(1, 1, n_cols)

    if has_mask:
        def kernel(pred_ref, gt_ref, mask_ref, out_ref):
            compute(pl.program_id(0), pred_ref[...], gt_ref[...],
                    mask_ref[...], out_ref)
    else:
        def kernel(pred_ref, gt_ref, out_ref):
            compute(pl.program_id(0), pred_ref[...], gt_ref[...], None, out_ref)
    return kernel


@functools.partial(jax.jit, static_argnames=("loss_type",))
def _colsum_pallas(pred2d, gt2d, mask2d, *, loss_type):
    """Per-column sums of elementwise_loss((pred - gt) * mask) over all rows
    of an (R, C) slab.  mask2d is an (R, 1) float32 array or None."""
    R, C = pred2d.shape
    has_mask = mask2d is not None
    vmem_limit = _vmem_limit_bytes()
    tile = _pick_row_tile(R, C, pred2d.dtype.itemsize, has_mask,
                          vmem_budget=vmem_limit // 2)
    nblk = pl.cdiv(R, tile)

    in_specs = [
        pl.BlockSpec((tile, C), lambda i: (i, 0)),
        pl.BlockSpec((tile, C), lambda i: (i, 0)),
    ]
    args = (pred2d, gt2d)
    if has_mask:
        in_specs.append(pl.BlockSpec((tile, 1), lambda i: (i, 0)))
        args = (pred2d, gt2d, mask2d)

    out = pl.pallas_call(
        _make_colsum_kernel(loss_type, R, tile, C, has_mask),
        out_shape=jax.ShapeDtypeStruct((nblk, 1, C), jnp.float32),
        grid=(nblk,),
        in_specs=in_specs,
        out_specs=pl.BlockSpec((1, 1, C), lambda i: (i, 0, 0)),
        compiler_params=pltpu.CompilerParams(
            dimension_semantics=("parallel",),
            vmem_limit_bytes=vmem_limit),
    )(*args)

    return jnp.sum(out, axis=(0, 1))                   # (C,) — tiny XLA epilogue


def _fold_factor(n_rows: int, n_cols: int) -> int:
    """Fold k rows into the lane axis ((R,D)->(R/k,k*D), a free reshape) to
    raise lane utilisation for small feature dims."""
    if n_cols >= 128:
        return 1
    for k in (8, 4, 2):
        if n_rows % k == 0 and n_cols * k <= 1024:
            return k
    return 1


class ReConsLossPallas:
    """JAX/Pallas re-implementation of core/models/loss.py::ReConsLoss."""

    def __init__(self, recons_loss: str, nb_joints: int):
        assert recons_loss in ("l1", "l2", "l1_smooth")
        self.loss_type = recons_loss
        self.nb_joints = nb_joints
        # 4 global motion of root, 12 local per joint (3 pos, 6 rot, 3 vel),
        # 3 global vel (xyz), 4 foot contact
        self.motion_dim = (nb_joints - 1) * 12 + 4 + 3 + 4

    # ---- shared streaming reduction --------------------------------------
    def _colsum(self, pred, gt, mask):
        D = pred.shape[-1]
        R = pred.size // D
        if mask is None:
            k = _fold_factor(R, D)                     # lane-density fold
        else:
            # TODO(synk): per-row mask needs rows on the sublane axis, so the
            # lane fold is only applied on the unmasked path.
            k = 1
        p2 = pred.reshape(R // k, k * D)               # free, layout-preserving
        g2 = gt.reshape(R // k, k * D)
        m2 = None if mask is None else mask.reshape(-1, 1).astype(jnp.float32)
        cs = _colsum_pallas(p2, g2, m2, loss_type=self.loss_type)
        if k > 1:
            cs = cs.reshape(k, D).sum(axis=0)          # back to per-original-column
        return cs, R

    @staticmethod
    def _range_mean(colsum, n_rows, lo, hi):
        return jnp.sum(colsum[lo:hi]) / jnp.float32(n_rows * (hi - lo))

    def _ranges(self, D):
        hi_m = min(self.motion_dim, D)
        hi_v = min((self.nb_joints - 1) * 3 + 4, D)
        return (0, hi_m), (4, hi_v)

    # ---- public API (mirrors the PyTorch module) --------------------------
    def forward(self, motion_pred, motion_gt, mask=None):
        D = motion_pred.shape[-1]
        (lo, hi), _ = self._ranges(D)
        colsum, R = self._colsum(motion_pred, motion_gt, mask)
        loss = self._range_mean(colsum, R, lo, hi)
        if mask is not None:
            norm = jnp.float32(motion_pred.size) / (
                jnp.sum(mask).astype(jnp.float32) * D)
            loss = loss * norm
        return loss

    def forward_vel(self, motion_pred, motion_gt, mask=None):
        D = motion_pred.shape[-1]
        _, (lo, hi) = self._ranges(D)
        colsum, R = self._colsum(motion_pred, motion_gt, mask)
        loss = self._range_mean(colsum, R, lo, hi)
        if mask is not None:
            norm = jnp.float32(R * (hi - lo)) / (
                jnp.sum(mask).astype(jnp.float32) * D)
            loss = loss * norm
        return loss

    def forward_both(self, motion_pred, motion_gt, mask=None):
        """Fused forward() + forward_vel(): a single HBM pass over pred/gt."""
        D = motion_pred.shape[-1]
        (lo_m, hi_m), (lo_v, hi_v) = self._ranges(D)
        colsum, R = self._colsum(motion_pred, motion_gt, mask)
        loss_m = self._range_mean(colsum, R, lo_m, hi_m)
        loss_v = self._range_mean(colsum, R, lo_v, hi_v)
        if mask is not None:
            msum = jnp.sum(mask).astype(jnp.float32)
            loss_m = loss_m * (jnp.float32(motion_pred.size) / (msum * D))
            loss_v = loss_v * (jnp.float32(R * (hi_v - lo_v)) / (msum * D))
        return loss_m, loss_v


# ---------------------------------------------------------------------------
# Pure-JAX reference (mirrors the PyTorch semantics) for a correctness check.
# ---------------------------------------------------------------------------
def _ref_elem_loss(d, loss_type):
    if loss_type == "l1":
        return jnp.abs(d)
    if loss_type == "l2":
        return d * d
    ad = jnp.abs(d)
    return jnp.where(ad < 1.0, 0.5 * d * d, ad - 0.5)


def _ref_forward(mod, pred, gt, mask=None):
    ps = pred[..., : mod.motion_dim]
    gs = gt[..., : mod.motion_dim]
    if mask is None:
        return jnp.mean(_ref_elem_loss(ps - gs, mod.loss_type))
    norm = pred.size / (jnp.sum(mask) * pred.shape[-1])
    d = ps * mask[..., None] - gs * mask[..., None]
    return jnp.mean(_ref_elem_loss(d, mod.loss_type)) * norm


def _ref_forward_vel(mod, pred, gt, mask=None):
    lo, hi = 4, (mod.nb_joints - 1) * 3 + 4
    ps = pred[..., lo:hi]
    gs = gt[..., lo:hi]
    if mask is None:
        return jnp.mean(_ref_elem_loss(ps - gs, mod.loss_type))
    norm = ps.size / (jnp.sum(mask) * pred.shape[-1])
    d = ps * mask[..., None] - gs * mask[..., None]
    return jnp.mean(_ref_elem_loss(d, mod.loss_type)) * norm


if __name__ == "__main__":
    import numpy as np

    # Synthetic config: nb_joints=5 -> motion_dim = 4*12 + 4 + 3 + 4 = 59,
    # full feature dim = motion_dim + 4 foot contacts = 63.
    nb_joints = 5
    motion_dim = (nb_joints - 1) * 12 + 4 + 3 + 4
    D = motion_dim + 4

    key = jax.random.PRNGKey(0)
    ok = True

    def check(a, b, rtol=1e-5, atol=1e-5):
        return np.allclose(np.asarray(a), np.asarray(b), rtol=rtol, atol=atol)

    # Two shape regimes: fold-friendly rows (R=16) and odd rows that force a
    # tail-masked partial last block (R=105).
    for (B, T) in ((2, 8), (3, 35)):
        k1, k2, k3, key = jax.random.split(key, 4)
        motion_pred = jax.random.normal(k1, (B, T, D), jnp.float32)
        motion_gt = jax.random.normal(k2, (B, T, D), jnp.float32)
        mask = (jax.random.uniform(k3, (B, T)) > 0.3).astype(jnp.float32)

        for loss_type in ("l1", "l2", "l1_smooth"):
            mod = ReConsLossPallas(loss_type, nb_joints)

            out = jax.block_until_ready(mod.forward(motion_pred, motion_gt))
            ok &= check(out, _ref_forward(mod, motion_pred, motion_gt))

            out_m = jax.block_until_ready(
                mod.forward(motion_pred, motion_gt, mask))
            ok &= check(out_m, _ref_forward(mod, motion_pred, motion_gt, mask))

            out_v = jax.block_until_ready(
                mod.forward_vel(motion_pred, motion_gt, mask))
            ok &= check(out_v, _ref_forward_vel(mod, motion_pred, motion_gt, mask))

            out_vn = jax.block_until_ready(
                mod.forward_vel(motion_pred, motion_gt))
            ok &= check(out_vn, _ref_forward_vel(mod, motion_pred, motion_gt))

            # Fused path: one HBM pass, both losses.
            loss_b, loss_bv = mod.forward_both(motion_pred, motion_gt, mask)
            jax.block_until_ready(loss_b)
            jax.block_until_ready(loss_bv)
            ok &= check(loss_b, _ref_forward(mod, motion_pred, motion_gt, mask))
            ok &= check(loss_bv, _ref_forward_vel(mod, motion_pred, motion_gt, mask))

    # bf16 inputs: native-dtype load, in-kernel f32 upcast, 16-row tile multiple.
    k1, k2, key = jax.random.split(key, 3)
    pred_f = jax.random.normal(k1, (3, 35, D), jnp.float32)
    gt_f = jax.random.normal(k2, (3, 35, D), jnp.float32)
    pred_bf = pred_f.astype(jnp.bfloat16)
    gt_bf = gt_f.astype(jnp.bfloat16)
    mod = ReConsLossPallas("l2", nb_joints)
    out_bf = jax.block_until_ready(mod.forward(pred_bf, gt_bf))
    ref_bf = _ref_forward(mod, pred_bf.astype(jnp.float32),
                          gt_bf.astype(jnp.float32))
    ok &= check(out_bf, ref_bf, rtol=1e-4, atol=1e-4)

    if not ok:
        raise SystemExit("mismatch vs reference")
    print("KERNEL_OK")
</pallas_src>

<mosaic_0001>
module attributes {stable_mosaic.version = 11 : i64} {
  func.func @kernel(%arg0: i32, %arg1: memref<8x504xf32, #tpu.memory_space<vmem>>, %arg2: memref<8x504xf32, #tpu.memory_space<vmem>>, %arg3: memref<1x1x504xf32, #tpu.memory_space<vmem>>) attributes {dimension_semantics = [#tpu.dimension_semantics<parallel>], iteration_bounds = array<i64: 1>, scalar_prefetch = 0 : i64, scratch_operands = 0 : i64, tpu.core_type = #tpu.core_type<tc>, window_params = [{transform_indices = @transform_0, window_bounds = array<i64: 8, 504>}, {transform_indices = @transform_1, window_bounds = array<i64: 8, 504>}, {transform_indices = @transform_2, window_bounds = array<i64: 1, 1, 504>}]} {
    %c0 = arith.constant 0 : index
    %c0_0 = arith.constant 0 : index
    %0 = vector.load %arg1[%c0, %c0_0] : memref<8x504xf32, #tpu.memory_space<vmem>>, vector<8x504xf32>
    %c0_1 = arith.constant 0 : index
    %c0_2 = arith.constant 0 : index
    %1 = vector.load %arg2[%c0_1, %c0_2] : memref<8x504xf32, #tpu.memory_space<vmem>>, vector<8x504xf32>
    %2 = arith.subf %0, %1 : vector<8x504xf32>
    %3 = math.absf %2 : vector<8x504xf32>
    %4 = tpu.iota {dimensions = array<i32: 0>} : vector<8x1xi32>
    %c8_i32 = arith.constant 8 : i32
    %5 = arith.muli %arg0, %c8_i32 : i32
    %6 = vector.broadcast %5 : i32 to vector<8x1xi32>
    %7 = arith.addi %4, %6 : vector<8x1xi32>
    %c2_i32 = arith.constant 2 : i32
    %8 = vector.broadcast %c2_i32 : i32 to vector<8x1xi32>
    %9 = arith.cmpi slt, %7, %8 : vector<8x1xi32>
    %cst = arith.constant 0.000000e+00 : f32
    %10 = vector.shape_cast %9 : vector<8x1xi1> to vector<8x1xi1>
    %11 = vector.broadcast %10 : vector<8x1xi1> to vector<8x504xi1>
    %12 = vector.broadcast %cst : f32 to vector<8x504xf32>
    %13 = arith.select %11, %3, %12 : vector<8x504xi1>, vector<8x504xf32>
    %cst_3 = arith.constant dense<0.000000e+00> : vector<504xf32>
    %14 = vector.multi_reduction <add>, %13, %cst_3 [0] : vector<8x504xf32> to vector<504xf32>
    %15 = vector.shape_cast %14 : vector<504xf32> to vector<1x504xf32>
    %16 = vector.shape_cast %15 : vector<1x504xf32> to vector<1x1x504xf32>
    %c0_4 = arith.constant 0 : index
    %c0_5 = arith.constant 0 : index
    %c0_6 = arith.constant 0 : index
    %17 = vector.load %arg3[%c0_4, %c0_5, %c0_6] : memref<1x1x504xf32, #tpu.memory_space<vmem>>, vector<1x1x504xf32>
    tpu.vector_store %arg3[%c0_4, %c0_5, %c0_6], %16 {strides = array<i32>} : memref<1x1x504xf32, #tpu.memory_space<vmem>>, vector<1x1x504xf32>,
    return
  }
  func.func @transform_0(%arg0: i32) -> (i32, i32) {
    %c0_i32 = arith.constant 0 : i32
    %c0_i32_0 = arith.constant 0 : i32
    return %arg0, %c0_i32 : i32, i32
  }
  func.func @transform_1(%arg0: i32) -> (i32, i32) {
    %c0_i32 = arith.constant 0 : i32
    %c0_i32_0 = arith.constant 0 : i32
    return %arg0, %c0_i32 : i32, i32
  }
  func.func @transform_2(%arg0: i32) -> (i32, i32, i32) {
    %c0_i32 = arith.constant 0 : i32
    %c0_i32_0 = arith.constant 0 : i32
    %c0_i32_1 = arith.constant 0 : i32
    return %arg0, %c0_i32, %c0_i32_0 : i32, i32, i32
  }
}

</mosaic_0001>

<llo_original>
// kernel: _colsum_pallas.1
$region0: #{_colsum_pallas.1}
  #allocation0 [shape = 'u32[]', space=smem, size = 0x4, offset = 0x4, fixed_abs, tag = 'smem constant byte address 0x4 - core index']
  #allocation1 [shape = 'u32[72,128]{1,0:T(1,128)}', space=vmem, size = 0x9000, scoped, tag = 'internal scratch']
  %s0 = inlined_call_operand.hbm [shape: f32[2,504], index: 0, kind: input, shape index: {}]
  %s1 = inlined_call_operand.hbm [shape: f32[2,504], index: 1, kind: input, shape index: {}]
  %s2 = inlined_call_operand.hbm [shape: f32[1,1,504], index: 2, kind: output, shape index: {}]
  %s3 = sld [smem:[#allocation0]]
  $region26: #{_colsum_pallas.1} parent=0
    _
  %s5 = ssub.s32 1, %s3
  %s6 = scalar_select 0, %s5, %s3
  $region1: #{_colsum_pallas.1} parent=0
    #allocation2 [shape = 'u8[16384]{0}', space=vmem, size = 0x4000, scoped, tag = 'input window, operand 0, single buffered']
    #allocation3 [shape = 's32[1]{0}', space=sflag, size = 0x4, scoped, tag = 'scoped memory for _colsum_pallas.1']
    #allocation4 [shape = 's32[1]{0}', space=sflag, size = 0x4, scoped, tag = 'scoped memory for _colsum_pallas.1']
    #allocation5 [shape = 'u8[16384]{0}', space=vmem, size = 0x4000, scoped, tag = 'input window, operand 1, single buffered']
    #allocation6 [shape = 's32[1]{0}', space=sflag, size = 0x4, scoped, tag = 'scoped memory for _colsum_pallas.1']
    #allocation7 [shape = 'u8[2048]{0}', space=vmem, size = 0x800, scoped, tag = 'output window, operand 0, single buffered']
    %7 = vsyncpa [#allocation3], 0
    %8 = vsyncpa [#allocation6], 0
    %9 = vsyncpa [#allocation4], 0
    // Predicated region
    $region2: #{_colsum_pallas.1} parent=1 // pred_check
      _
    $region3: #{_colsum_pallas.1} parent=1 // pred_check_branch
      %11 = sbr.rel (0) target = $region5
    $region4: #{_colsum_pallas.1} parent=1 // pred_region
      %13 = vsyncadd [#allocation3], 384
      %s14 = sshll.u32 %s0, 4
      %s15 = int_to_ptr.hbm [resolvable:$true] %s14
      %s16 = sshll.u32 [#allocation2], 4
      %s17 = int_to_ptr.vmem [resolvable:$true] %s16
      %22 = dma.hbm_to_vmem [thread:$0]  %s15, 128, %s17, [#allocation3], 128, 128, 8
    $region5: #{_colsum_pallas.1} parent=1 // pred_fallthru
      _
    // Predicated region
    $region6: #{_colsum_pallas.1} parent=1 // pred_check
      _
    $region7: #{_colsum_pallas.1} parent=1 // pred_check_branch
      %24 = sbr.rel (0) target = $region9
    $region8: #{_colsum_pallas.1} parent=1 // pred_region
      %26 = vsyncadd [#allocation6], 384
      %s27 = sshll.u32 %s1, 4
      %s28 = int_to_ptr.hbm [resolvable:$true] %s27
      %s29 = sshll.u32 [#allocation5], 4
      %s30 = int_to_ptr.vmem [resolvable:$true] %s29
      %35 = dma.hbm_to_vmem [thread:$0]  %s28, 128, %s30, [#allocation6], 128, 128, 8
    $region9: #{_colsum_pallas.1} parent=1 // pred_fallthru
      _
    // Predicated region
    $region10: #{_colsum_pallas.1} parent=1 // pred_check
      _
    $region11: #{_colsum_pallas.1} parent=1 // pred_check_branch
      %37 = sbr.rel (0) target = $region13
    $region12: #{_colsum_pallas.1} parent=1 // pred_region
      %39 = dma.done [#allocation3], 512
    $region13: #{_colsum_pallas.1} parent=1 // pred_fallthru
      _
    // Predicated region
    $region14: #{_colsum_pallas.1} parent=1 // pred_check
      _
    $region15: #{_colsum_pallas.1} parent=1 // pred_check_branch
      %41 = sbr.rel (0) target = $region17
    $region16: #{_colsum_pallas.1} parent=1 // pred_region
      %43 = dma.done [#allocation6], 512
    $region17: #{_colsum_pallas.1} parent=1 // pred_fallthru
      _
    %v44 = vld [vmem:[#allocation2] sm:$0xff]
    %v45 = vld [vmem:[#allocation2 + $0x8] sm:$0xff]
    %v46 = vld [vmem:[#allocation2 + $0x10] sm:$0xff]
    %v47 = vld [vmem:[#allocation2 + $0x18] sm:$0xff]
    %v48 = vld [vmem:[#allocation5] sm:$0xff]
    %v49 = vld [vmem:[#allocation5 + $0x8] sm:$0xff]
    %v50 = vld [vmem:[#allocation5 + $0x10] sm:$0xff]
    %v51 = vld [vmem:[#allocation5 + $0x18] sm:$0xff]
    %v52 = vsub.f32 %v44, %v48
    %v53 = vsub.f32 %v45, %v49
    %v54 = vsub.f32 %v46, %v50
    %v55 = vsub.f32 %v47, %v51
    %v56 = vand.u32 2147483647, %v52
    %v57 = vand.u32 2147483647, %v53
    %v58 = vand.u32 2147483647, %v54
    %v59 = vand.u32 2147483647, %v55
    %v60 = vlaneseq
    %v61 = vshrl.u32 %v60, 7
    %s62 = smul.u32 0, 8
    %v63 = vstv %s62
    %v64 = vadd.s32 %v61, %v63
    %vm65 = vcmp.lt.s32.totalorder %v64, 2
    %v66 = vsel %vm65, 1, 0
    %vm67 = vcmp.eq.s32.totalorder %v66, 1
    %72 = vst [vmem:[#allocation1] ss:$4 sm:$0xff] %v56
    %s73 = scalar_lea.vmem [#allocation1], 1
    %74 = vst [vmem:[%s73] ss:$4 sm:$0xff] %v57
    %s75 = scalar_lea.vmem [#allocation1], 2
    %76 = vst [vmem:[%s75] ss:$4 sm:$0xff] %v58
    %s77 = scalar_lea.vmem [#allocation1], 3
    %78 = vst [vmem:[%s77] ss:$4 sm:$0xff] %v59
    %v79 = vld.sshfl [vmem:[#allocation1] sm:$0xff pattern:$0x73625140]
    %v80 = vld.sshfl [vmem:[#allocation1 + $0x8] sm:$0xff pattern:$0x73625140]
    %v81 = vld.sshfl [vmem:[#allocation1 + $0x10] sm:$0xff pattern:$0x73625140]
    %v82 = vld.sshfl [vmem:[#allocation1 + $0x18] sm:$0xff pattern:$0x73625140]
    %v87 = vsel %vm67, %v79, 0.0
    %v88 = vsel %vm67, %v80, 0.0
    %v89 = vsel %vm67, %v81, 0.0
    %v90 = vsel %vm67, %v82, 0.0
    %v91 = vrot.slane %v87, 4
    %v92 = vadd.f32 %v87, %v91
    %v93 = vrot.slane %v92, 2
    %v94 = vadd.f32 %v92, %v93
    %v95 = vrot.slane %v94, 1
    %v96 = vadd.f32 %v94, %v95
    %v97 = vrot.slane %v88, 4
    %v98 = vadd.f32 %v88, %v97
    %v99 = vrot.slane %v98, 2
    %v100 = vadd.f32 %v98, %v99
    %v101 = vrot.slane %v100, 1
    %v102 = vadd.f32 %v100, %v101
    %v103 = vrot.slane %v89, 4
    %v104 = vadd.f32 %v89, %v103
    %v105 = vrot.slane %v104, 2
    %v106 = vadd.f32 %v104, %v105
    %v107 = vrot.slane %v106, 1
    %v108 = vadd.f32 %v106, %v107
    %vm109 = vcmask 982016
    %v110 = vsel %vm109, %v90, 0.0
    %v111 = vrot.slane %v110, 4
    %v112 = vadd.f32 %v110, %v111
    %v113 = vrot.slane %v112, 2
    %v114 = vadd.f32 %v112, %v113
    %v115 = vrot.slane %v114, 1
    %v116 = vadd.f32 %v114, %v115
    %v121 = vrot.slane %v102, 7
    %v122 = vrot.slane %v108, 6
    %v123 = vrot.slane %v116, 5
    %vm124 = vcmask 1040384
    %v125 = vsel %vm124, %v96, %v121
    %vm126 = vcmask 1042434
    %v127 = vsel %vm126, %v122, %v123
    %vm128 = vcmask 1041408
    %v129 = vsel %vm128, %v125, %v127
    %v131 = vlaneseq
    %vm132 = vcmp.ge.s32.totalorder %v131, 0
    %vm133 = vcmp.lt.s32.totalorder %v131, 504
    %vm134 = vmand %vm132, %vm133
    %135 = vst.msk [vmem:[#allocation7] sm:$0xf] %vm134, %v129
    // Predicated region
    $region18: #{_colsum_pallas.1} parent=1 // pred_check
      _
    $region19: #{_colsum_pallas.1} parent=1 // pred_check_branch
      %137 = sbr.rel (0) target = $region21
    $region20: #{_colsum_pallas.1} parent=1 // pred_region
      %139 = vsyncadd [#allocation4], 0
      %s141 = sshll.u32 [#allocation7], 4
      %s142 = int_to_ptr.vmem [resolvable:$true] %s141
      %s143 = sshll.u32 %s2, 4
      %s144 = int_to_ptr.hbm [resolvable:$true] %s143
      %146 = dma.vmem_to_hbm [thread:$0]  %s142, 64, %s144, [#allocation4]
    $region21: #{_colsum_pallas.1} parent=1 // pred_fallthru
      _
    // Predicated region
    $region22: #{_colsum_pallas.1} parent=1 // pred_check
      _
    $region23: #{_colsum_pallas.1} parent=1 // pred_check_branch
      %148 = sbr.rel (0) target = $region25
    $region24: #{_colsum_pallas.1} parent=1 // pred_region
      %150 = dma.done [#allocation4], 64
    $region25: #{_colsum_pallas.1} parent=1 // pred_fallthru
      _
    %151 = vsyncpa [#allocation3], 1
    %152 = vsyncpa [#allocation6], 1
    %153 = vsyncpa [#allocation4], 1

</llo_original>
